<compile_context>
chip_gen: v7x
topology: tpu7x:2x2x1
jax: 0.10.0
libtpu: 0.0.40
codegen_flags: <defaults>
</compile_context>

<pallas_src>
import math

import jax
import jax.numpy as jnp
from jax.experimental import pallas as pl
from jax.experimental.pallas import tpu as pltpu


# Per double-buffered slab cap: 8 MiB/buffer -> <=32 MiB total footprint, which
# fits every generation (64 MiB/TC on v7x, 128 MiB on v5e/v6e) and is already
# well past the ~1 MiB block size where the copy sits at ~85% of HBM roofline.
_PER_BUFFER_CAP = 8 << 20
_TINY_FALLBACK_BYTES = 2 << 20   # below this, defer to XLA's native concat
_MIN_DMA_CHUNK_BYTES = 512       # per-row contiguous chunk needed for efficient DMA


def _offsets(widths):
    offs = [0]
    for w in widths:
        offs.append(offs[-1] + w)
    return tuple(offs)


def _sublane_multiple(dtype):
    # Sublane packing: 8 rows (f32), 16 (bf16/f16), 32 (int8/fp8).
    return max(8, 32 // jnp.dtype(dtype).itemsize)


def _vmem_budget_bytes():
    # Per-generation VMEM capacity (128 MiB on v5e/v6e, 64 MiB per TC on v7x);
    # keep ~40% headroom for Mosaic internals.  Fall back to the smallest
    # (v7x) capacity if the query is unavailable.
    cap = 64 << 20
    try:
        info = pltpu.get_tpu_info()
        cap = int(getattr(info, "vmem_capacity_bytes", cap))
    except Exception:
        pass
    return int(cap * 0.6)


def _pick_tm(B, total_w, itemsize, dtype):
    """Row-tile size from a VMEM byte budget (4 double-buffered slabs)."""
    sub = _sublane_multiple(dtype)
    row_bytes = max(total_w * itemsize, 1)
    per_buffer = min(_vmem_budget_bytes() // 4, _PER_BUFFER_CAP)
    tm = per_buffer // row_bytes
    tm = (tm // sub) * sub            # sublane packing multiple
    tm = max(tm, min(B, sub))         # at least one packed tile (or all rows)
    tm = min(tm, B)
    return max(int(tm), 1)


def _make_concat4_vmem_kernel(widths):
    offs = _offsets(widths)

    def kernel(c0_ref, c1_ref, c2_ref, c3_ref, o_ref):
        # Pure copies: each input fills a static, contiguous column range of
        # the flattened output row.  Offsets are Python ints -> static slices.
        # (If offsets are not 128-lane aligned this is still correct, just
        #  masked stores; such cases are routed to the DMA path in auto mode.)
        for ref, lo, hi in zip((c0_ref, c1_ref, c2_ref, c3_ref), offs[:-1], offs[1:]):
            o_ref[:, lo:hi] = ref[...]

    return kernel


def _make_concat4_dma_kernel(widths):
    offs = _offsets(widths)

    def kernel(c0_ref, c1_ref, c2_ref, c3_ref, o_ref, sems):
        # Four strided HBM->HBM DMAs, one per input, all in flight at once.
        copies = []
        for idx, (ref, lo, hi) in enumerate(
            zip((c0_ref, c1_ref, c2_ref, c3_ref), offs[:-1], offs[1:])
        ):
            cp = pltpu.make_async_copy(ref, o_ref.at[:, lo:hi], sems.at[idx])
            cp.start()
            copies.append(cp)
        for cp in copies:
            cp.wait()

    return kernel


def concat4(c0, c1, c2, c3, *, mode="auto", tm=None, core_parallel=False,
            interpret=False):
    """torch.cat([c0, c1, c2, c3], dim=1) for same-dtype tensors of rank >= 2
    that match on every dim except dim 1 (row-major layout assumed)."""
    inputs = (c0, c1, c2, c3)
    B = c0.shape[0]
    trailing = c0.shape[2:]
    dtype = c0.dtype
    for c in inputs:
        assert c.shape[0] == B and c.shape[2:] == trailing and c.dtype == dtype

    widths = [int(math.prod(c.shape[1:])) for c in inputs]
    total_w = sum(widths)
    offs = _offsets(widths)
    itemsize = jnp.dtype(dtype).itemsize
    out_nd_shape = (B, sum(c.shape[1] for c in inputs)) + trailing

    total_bytes = B * total_w * itemsize

    if mode == "auto":
        if total_bytes < _TINY_FALLBACK_BYTES:
            mode = "xla"
        else:
            lane_aligned = all(o % 128 == 0 for o in offs)
            min_chunk_bytes = min(widths) * itemsize
            # Rows so wide that even a minimal sublane tile blows the
            # per-buffer budget -> VMEM staging stops paying off.
            rows_too_wide = (
                total_w * itemsize * _sublane_multiple(dtype) > _PER_BUFFER_CAP
            )
            if min_chunk_bytes >= _MIN_DMA_CHUNK_BYTES and (
                (not lane_aligned) or rows_too_wide
            ):
                mode = "dma"
            else:
                mode = "vmem"

    if mode == "xla":
        return jnp.concatenate(inputs, axis=1)

    # Collapse everything after the batch dim -> lane-dense 2-D copies.
    flat = [c.reshape(B, w) for c, w in zip(inputs, widths)]
    cost = pl.CostEstimate(
        flops=0, transcendentals=0, bytes_accessed=2 * total_bytes  # read + write
    )

    if mode == "dma":
        # Direct HBM->HBM strided copies; zero VMEM footprint, byte-granular
        # so lane alignment is irrelevant.
        out2d = pl.pallas_call(
            _make_concat4_dma_kernel(widths),
            out_shape=jax.ShapeDtypeStruct((B, total_w), dtype),
            in_specs=[pl.BlockSpec(memory_space=pl.ANY)] * 4,
            out_specs=pl.BlockSpec(memory_space=pl.ANY),
            scratch_shapes=[pltpu.SemaphoreType.DMA((4,))],
            compiler_params=pltpu.CompilerParams(has_side_effects=True),
            cost_estimate=cost,
            interpret=interpret,
        )(*flat)
        return out2d.reshape(out_nd_shape)

    # mode == "vmem": batch-tiled, auto-pipelined VMEM staging.
    if tm is None:
        tm = _pick_tm(B, total_w, itemsize, dtype)
    tm = min(int(tm), B)
    grid = (pl.cdiv(B, tm),)

    # Explicit scoped-VMEM limit sized to the double-buffered footprint
    # (4 slabs of tm x total_W) plus headroom, clamped to fit every chip.
    footprint = 4 * tm * total_w * itemsize
    vmem_limit = int(footprint * 1.25) + (2 << 20)
    vmem_limit = max(vmem_limit, 32 << 20)
    vmem_limit = min(vmem_limit, 64 << 20)

    # On v7x, pass core_parallel=True to split the batch-tile axis across the
    # two TensorCores (plain "parallel" does not change codegen there).
    dims = (pltpu.CORE_PARALLEL,) if core_parallel else ("parallel",)

    out2d = pl.pallas_call(
        _make_concat4_vmem_kernel(widths),
        out_shape=jax.ShapeDtypeStruct((B, total_w), dtype),
        grid_spec=pltpu.PrefetchScalarGridSpec(
            num_scalar_prefetch=0,
            grid=grid,
            in_specs=[pl.BlockSpec((tm, w), lambda i: (i, 0)) for w in widths],
            out_specs=pl.BlockSpec((tm, total_w), lambda i: (i, 0)),
        ),
        compiler_params=pltpu.CompilerParams(
            dimension_semantics=dims,
            vmem_limit_bytes=vmem_limit,
        ),
        cost_estimate=cost,
        interpret=interpret,
    )(*flat)
    return out2d.reshape(out_nd_shape)


if __name__ == "__main__":
    key = jax.random.PRNGKey(0)
    k0, k1, k2, k3 = jax.random.split(key, 4)

    batch, channels, spatial = 2, 4, 16
    shape = (batch, channels, spatial, spatial)
    c0 = jax.random.normal(k0, shape, dtype=jnp.float32)
    c1 = jax.random.normal(k1, shape, dtype=jnp.float32)
    c2 = jax.random.normal(k2, shape, dtype=jnp.float32)
    c3 = jax.random.normal(k3, shape, dtype=jnp.float32)

    # Reference: plain JAX concat along axis 1 (matches torch.cat dim=1).
    y_ref = jnp.concatenate([c0, c1, c2, c3], axis=1)

    # Force the Pallas VMEM-staged kernel (auto mode would route this tiny
    # 32 KiB case to XLA's native concat).
    y = jax.block_until_ready(concat4(c0, c1, c2, c3, mode="vmem"))
    assert y.shape == (batch, 4 * channels, spatial, spatial)
    assert jnp.array_equal(y, y_ref)

    # Auto dispatch (tiny input -> XLA fallback) must agree as well.
    y_auto = jax.block_until_ready(concat4(c0, c1, c2, c3))
    assert jnp.array_equal(y_auto, y_ref)

    print("KERNEL_OK")
</pallas_src>

<mosaic_0001>
module attributes {stable_mosaic.version = 11 : i64} {
  func.func @kernel(%arg0: i32, %arg1: memref<2x1024xf32, #tpu.memory_space<vmem>>, %arg2: memref<2x1024xf32, #tpu.memory_space<vmem>>, %arg3: memref<2x1024xf32, #tpu.memory_space<vmem>>, %arg4: memref<2x1024xf32, #tpu.memory_space<vmem>>, %arg5: memref<2x4096xf32, #tpu.memory_space<vmem>>) attributes {dimension_semantics = [#tpu.dimension_semantics<parallel>], iteration_bounds = array<i64: 1>, scalar_prefetch = 0 : i64, scratch_operands = 0 : i64, tpu.core_type = #tpu.core_type<tc>, window_params = [{transform_indices = @transform_0, window_bounds = array<i64: 2, 1024>}, {transform_indices = @transform_1, window_bounds = array<i64: 2, 1024>}, {transform_indices = @transform_2, window_bounds = array<i64: 2, 1024>}, {transform_indices = @transform_3, window_bounds = array<i64: 2, 1024>}, {transform_indices = @transform_4, window_bounds = array<i64: 2, 4096>}]} {
    %c0 = arith.constant 0 : index
    %c0_0 = arith.constant 0 : index
    %0 = vector.load %arg1[%c0, %c0_0] : memref<2x1024xf32, #tpu.memory_space<vmem>>, vector<2x1024xf32>
    %c0_1 = arith.constant 0 : index
    %c0_2 = arith.constant 0 : index
    %1 = vector.load %arg5[%c0_1, %c0_2] : memref<2x4096xf32, #tpu.memory_space<vmem>>, vector<2x1024xf32>
    tpu.vector_store %arg5[%c0_1, %c0_2], %0 {strides = array<i32>} : memref<2x4096xf32, #tpu.memory_space<vmem>>, vector<2x1024xf32>,
    %c0_3 = arith.constant 0 : index
    %c0_4 = arith.constant 0 : index
    %2 = vector.load %arg2[%c0_3, %c0_4] : memref<2x1024xf32, #tpu.memory_space<vmem>>, vector<2x1024xf32>
    %c0_5 = arith.constant 0 : index
    %c1024 = arith.constant 1024 : index
    %3 = vector.load %arg5[%c0_5, %c1024] : memref<2x4096xf32, #tpu.memory_space<vmem>>, vector<2x1024xf32>
    tpu.vector_store %arg5[%c0_5, %c1024], %2 {strides = array<i32>} : memref<2x4096xf32, #tpu.memory_space<vmem>>, vector<2x1024xf32>,
    %c0_6 = arith.constant 0 : index
    %c0_7 = arith.constant 0 : index
    %4 = vector.load %arg3[%c0_6, %c0_7] : memref<2x1024xf32, #tpu.memory_space<vmem>>, vector<2x1024xf32>
    %c0_8 = arith.constant 0 : index
    %c2048 = arith.constant 2048 : index
    %5 = vector.load %arg5[%c0_8, %c2048] : memref<2x4096xf32, #tpu.memory_space<vmem>>, vector<2x1024xf32>
    tpu.vector_store %arg5[%c0_8, %c2048], %4 {strides = array<i32>} : memref<2x4096xf32, #tpu.memory_space<vmem>>, vector<2x1024xf32>,
    %c0_9 = arith.constant 0 : index
    %c0_10 = arith.constant 0 : index
    %6 = vector.load %arg4[%c0_9, %c0_10] : memref<2x1024xf32, #tpu.memory_space<vmem>>, vector<2x1024xf32>
    %c0_11 = arith.constant 0 : index
    %c3072 = arith.constant 3072 : index
    %7 = vector.load %arg5[%c0_11, %c3072] : memref<2x4096xf32, #tpu.memory_space<vmem>>, vector<2x1024xf32>
    tpu.vector_store %arg5[%c0_11, %c3072], %6 {strides = array<i32>} : memref<2x4096xf32, #tpu.memory_space<vmem>>, vector<2x1024xf32>,
    return
  }
  func.func @transform_0(%arg0: i32) -> (i32, i32) {
    %c0_i32 = arith.constant 0 : i32
    %c0_i32_0 = arith.constant 0 : i32
    return %arg0, %c0_i32 : i32, i32
  }
  func.func @transform_1(%arg0: i32) -> (i32, i32) {
    %c0_i32 = arith.constant 0 : i32
    %c0_i32_0 = arith.constant 0 : i32
    return %arg0, %c0_i32 : i32, i32
  }
  func.func @transform_2(%arg0: i32) -> (i32, i32) {
    %c0_i32 = arith.constant 0 : i32
    %c0_i32_0 = arith.constant 0 : i32
    return %arg0, %c0_i32 : i32, i32
  }
  func.func @transform_3(%arg0: i32) -> (i32, i32) {
    %c0_i32 = arith.constant 0 : i32
    %c0_i32_0 = arith.constant 0 : i32
    return %arg0, %c0_i32 : i32, i32
  }
  func.func @transform_4(%arg0: i32) -> (i32, i32) {
    %c0_i32 = arith.constant 0 : i32
    %c0_i32_0 = arith.constant 0 : i32
    return %arg0, %c0_i32 : i32, i32
  }
}

</mosaic_0001>

<llo_original>
// kernel: tpu_custom_call.1
$region0: #{tpu_custom_call.1}
  #allocation0 [shape = 'u32[]', space=smem, size = 0x4, offset = 0x4, fixed_abs, tag = 'smem constant byte address 0x4 - core index']
  #allocation1 [shape = 'u32[144,128]{1,0:T(1,128)}', space=vmem, size = 0x12000, scoped, tag = 'internal scratch']
  %s0 = inlined_call_operand.hbm [shape: f32[2,1024], index: 0, kind: input, shape index: {}]
  %s1 = inlined_call_operand.hbm [shape: f32[2,1024], index: 1, kind: input, shape index: {}]
  %s2 = inlined_call_operand.hbm [shape: f32[2,1024], index: 2, kind: input, shape index: {}]
  %s3 = inlined_call_operand.hbm [shape: f32[2,1024], index: 3, kind: input, shape index: {}]
  %s4 = inlined_call_operand.hbm [shape: f32[2,4096], index: 4, kind: output, shape index: {}]
  %s5 = sld [smem:[#allocation0]]
  $region42: #{tpu_custom_call.1} parent=0
    _
  %s7 = ssub.s32 1, %s5
  %s8 = scalar_select 0, %s7, %s5
  $region1: #{tpu_custom_call.1} parent=0
    #allocation2 [shape = 'u8[8192]{0}', space=vmem, size = 0x2000, scoped, tag = 'input window, operand 0, single buffered']
    #allocation3 [shape = 's32[1]{0}', space=sflag, size = 0x4, scoped, tag = 'scoped memory for tpu_custom_call.1']
    #allocation4 [shape = 's32[1]{0}', space=sflag, size = 0x4, scoped, tag = 'scoped memory for tpu_custom_call.1']
    #allocation5 [shape = 'u8[8192]{0}', space=vmem, size = 0x2000, scoped, tag = 'input window, operand 1, single buffered']
    #allocation6 [shape = 's32[1]{0}', space=sflag, size = 0x4, scoped, tag = 'scoped memory for tpu_custom_call.1']
    #allocation7 [shape = 'u8[8192]{0}', space=vmem, size = 0x2000, scoped, tag = 'input window, operand 2, single buffered']
    #allocation8 [shape = 'u8[8192]{0}', space=vmem, size = 0x2000, scoped, tag = 'input window, operand 3, single buffered']
    #allocation9 [shape = 's32[1]{0}', space=sflag, size = 0x4, scoped, tag = 'scoped memory for tpu_custom_call.1']
    #allocation10 [shape = 'u8[32768]{0}', space=vmem, size = 0x8000, scoped, tag = 'output window, operand 0, single buffered']
    %9 = vsyncpa [#allocation3], 0
    %10 = vsyncpa [#allocation6], 0
    %11 = vsyncpa [#allocation9], 0
    %12 = vsyncpa [#allocation4], 0
    // Predicated region
    $region2: #{tpu_custom_call.1} parent=1 // pred_check
      _
    $region3: #{tpu_custom_call.1} parent=1 // pred_check_branch
      %14 = sbr.rel (0) target = $region5
    $region4: #{tpu_custom_call.1} parent=1 // pred_region
      %s16 = ssub.s32 256, 256
      %17 = vsyncadd [#allocation3], %s16
      %s19 = sshll.u32 [#allocation2], 4
      %s20 = int_to_ptr.vmem [resolvable:$true] %s19
      %22 = dma.hbm_to_vmem [thread:$0]  %s0, 256, %s20, [#allocation3]
    $region5: #{tpu_custom_call.1} parent=1 // pred_fallthru
      _
    // Predicated region
    $region6: #{tpu_custom_call.1} parent=1 // pred_check
      _
    $region7: #{tpu_custom_call.1} parent=1 // pred_check_branch
      %24 = sbr.rel (0) target = $region9
    $region8: #{tpu_custom_call.1} parent=1 // pred_region
      %s26 = ssub.s32 256, 256
      %27 = vsyncadd [#allocation6], %s26
      %s29 = sshll.u32 [#allocation5], 4
      %s30 = int_to_ptr.vmem [resolvable:$true] %s29
      %32 = dma.hbm_to_vmem [thread:$0]  %s1, 256, %s30, [#allocation6]
    $region9: #{tpu_custom_call.1} parent=1 // pred_fallthru
      _
    // Predicated region
    $region10: #{tpu_custom_call.1} parent=1 // pred_check
      _
    $region11: #{tpu_custom_call.1} parent=1 // pred_check_branch
      %34 = sbr.rel (0) target = $region13
    $region12: #{tpu_custom_call.1} parent=1 // pred_region
      %s36 = ssub.s32 256, 256
      %37 = vsyncadd [#allocation6], %s36
      %s39 = sshll.u32 [#allocation7], 4
      %s40 = int_to_ptr.vmem [resolvable:$true] %s39
      %42 = dma.hbm_to_vmem [thread:$0]  %s2, 256, %s40, [#allocation6]
    $region13: #{tpu_custom_call.1} parent=1 // pred_fallthru
      _
    // Predicated region
    $region14: #{tpu_custom_call.1} parent=1 // pred_check
      _
    $region15: #{tpu_custom_call.1} parent=1 // pred_check_branch
      %44 = sbr.rel (0) target = $region17
    $region16: #{tpu_custom_call.1} parent=1 // pred_region
      %s46 = ssub.s32 256, 256
      %47 = vsyncadd [#allocation9], %s46
      %s49 = sshll.u32 [#allocation8], 4
      %s50 = int_to_ptr.vmem [resolvable:$true] %s49
      %52 = dma.hbm_to_vmem [thread:$0]  %s3, 256, %s50, [#allocation9]
    $region17: #{tpu_custom_call.1} parent=1 // pred_fallthru
      _
    // Predicated region
    $region18: #{tpu_custom_call.1} parent=1 // pred_check
      _
    $region19: #{tpu_custom_call.1} parent=1 // pred_check_branch
      %54 = sbr.rel (0) target = $region21
    $region20: #{tpu_custom_call.1} parent=1 // pred_region
      %55 = dma.done [#allocation3], 256
    $region21: #{tpu_custom_call.1} parent=1 // pred_fallthru
      _
    // Predicated region
    $region22: #{tpu_custom_call.1} parent=1 // pred_check
      _
    $region23: #{tpu_custom_call.1} parent=1 // pred_check_branch
      %57 = sbr.rel (0) target = $region25
    $region24: #{tpu_custom_call.1} parent=1 // pred_region
      %58 = dma.done [#allocation6], 256
    $region25: #{tpu_custom_call.1} parent=1 // pred_fallthru
      _
    // Predicated region
    $region26: #{tpu_custom_call.1} parent=1 // pred_check
      _
    $region27: #{tpu_custom_call.1} parent=1 // pred_check_branch
      %60 = sbr.rel (0) target = $region29
    $region28: #{tpu_custom_call.1} parent=1 // pred_region
      %61 = dma.done [#allocation6], 256
    $region29: #{tpu_custom_call.1} parent=1 // pred_fallthru
      _
    // Predicated region
    $region30: #{tpu_custom_call.1} parent=1 // pred_check
      _
    $region31: #{tpu_custom_call.1} parent=1 // pred_check_branch
      %63 = sbr.rel (0) target = $region33
    $region32: #{tpu_custom_call.1} parent=1 // pred_region
      %64 = dma.done [#allocation9], 256
    $region33: #{tpu_custom_call.1} parent=1 // pred_fallthru
      _
    %v65 = vld [vmem:[#allocation2] sm:$0xff]
    %v66 = vld [vmem:[#allocation2 + $0x8] sm:$0xff]
    %67 = vst [vmem:[#allocation10] sm:$0xff] %v65
    %68 = vst [vmem:[#allocation10 + $0x8] sm:$0xff] %v66
    %v69 = vld [vmem:[#allocation5] sm:$0xff]
    %v70 = vld [vmem:[#allocation5 + $0x8] sm:$0xff]
    %71 = vst [vmem:[#allocation10 + $0x10] sm:$0xff] %v69
    %72 = vst [vmem:[#allocation10 + $0x18] sm:$0xff] %v70
    %v73 = vld [vmem:[#allocation7] sm:$0xff]
    %v74 = vld [vmem:[#allocation7 + $0x8] sm:$0xff]
    %75 = vst [vmem:[#allocation10 + $0x20] sm:$0xff] %v73
    %76 = vst [vmem:[#allocation10 + $0x28] sm:$0xff] %v74
    %v77 = vld [vmem:[#allocation8] sm:$0xff]
    %v78 = vld [vmem:[#allocation8 + $0x8] sm:$0xff]
    %79 = vst [vmem:[#allocation10 + $0x30] sm:$0xff] %v77
    %80 = vst [vmem:[#allocation10 + $0x38] sm:$0xff] %v78
    // Predicated region
    $region34: #{tpu_custom_call.1} parent=1 // pred_check
      _
    $region35: #{tpu_custom_call.1} parent=1 // pred_check_branch
      %82 = sbr.rel (0) target = $region37
    $region36: #{tpu_custom_call.1} parent=1 // pred_region
      %s84 = ssub.s32 1024, 1024
      %85 = vsyncadd [#allocation4], %s84
      %s87 = sshll.u32 [#allocation10], 4
      %s88 = int_to_ptr.vmem [resolvable:$true] %s87
      %90 = dma.vmem_to_hbm [thread:$0]  %s88, 1024, %s4, [#allocation4]
    $region37: #{tpu_custom_call.1} parent=1 // pred_fallthru
      _
    // Predicated region
    $region38: #{tpu_custom_call.1} parent=1 // pred_check
      _
    $region39: #{tpu_custom_call.1} parent=1 // pred_check_branch
      %92 = sbr.rel (0) target = $region41
    $region40: #{tpu_custom_call.1} parent=1 // pred_region
      %93 = dma.done [#allocation4], 1024
    $region41: #{tpu_custom_call.1} parent=1 // pred_fallthru
      _
    %94 = vsyncpa [#allocation3], 1
    %95 = vsyncpa [#allocation6], 1
    %96 = vsyncpa [#allocation9], 1
    %97 = vsyncpa [#allocation4], 1

</llo_original>
